<compile_context>
chip_gen: v7x
topology: tpu7x:2x2x1
jax: 0.10.0
libtpu: 0.0.40
codegen_flags: <defaults>
</compile_context>

<pallas_src>
import functools

import numpy as np
import jax
import jax.numpy as jnp
from jax.experimental import pallas as pl
from jax.experimental.pallas import tpu as pltpu


def _pick_channel_tile(C: int, H: int, W: int, itemsize: int) -> int:
    """Largest channel tile that divides C, is lane-aligned (multiple of 128
    when C is), and keeps a double-buffered input tile well under the scoped
    VMEM budget (sized for v7x's 64 MiB physical VMEM)."""
    if C % 128 != 0:
        return C  # small / unaligned channel count: take it whole (last-dim == full dim)
    budget = 8 * 1024 * 1024  # bytes per single input buffer (x2 for double-buffering)
    max_ct = max(128, (budget // max(1, H * W * itemsize)) // 128 * 128)
    ct = min(C, max_ct)
    while C % ct != 0:
        ct -= 128
    return ct


def _pool_kernel(x_ref, o_ref, *, out_h, out_w, sh, sw, kh, kw):
    # x_ref: (H, W, Ct)   o_ref: (out_h, out_w, Ct)   (batch dim squeezed by BlockSpec)
    x = x_ref[...]                                # native dtype, already in VMEM
    inv_area = jnp.float32(1.0 / (kh * kw))

    # Pass 1: reduce each H-window (leading axis -> pure VPU adds), f32 accum.
    rows = []
    for oh in range(out_h):
        win = x[oh * sh: oh * sh + kh].astype(jnp.float32)    # (kh, W, Ct)
        rows.append(jnp.sum(win, axis=0))                      # (W, Ct)
    rows = jnp.stack(rows, axis=0)                             # (out_h, W, Ct)

    # Pass 2: reduce each W-window of the partial sums.
    cols = []
    for ow in range(out_w):
        cols.append(jnp.sum(rows[:, ow * sw: ow * sw + kw, :], axis=1))  # (out_h, Ct)
    out = jnp.stack(cols, axis=1) * inv_area                   # (out_h, out_w, Ct)

    # Single lane-dense, whole-tile store.
    o_ref[...] = out.astype(o_ref.dtype)


def adaptive_avg_pool2d_custom(x: jax.Array, output_size) -> jax.Array:
    """JAX/Pallas equivalent of AdaptiveAvgPool2dCustom.forward.

    x: (N, C, H, W) array. output_size: (out_h, out_w) ints.
    """
    N, C, H, W = x.shape
    out_h, out_w = int(output_size[0]), int(output_size[1])

    # Static stride / kernel computation, exactly as the PyTorch module does.
    sh = int(np.floor(H / out_h))
    sw = int(np.floor(W / out_w))
    kh = H - (out_h - 1) * sh
    kw = W - (out_w - 1) * sw

    # Channels-last for the kernel: (N, H, W, C) so C rides the 128-lane axis.
    x_nhwc = jnp.transpose(x, (0, 2, 3, 1))
    Ct = _pick_channel_tile(C, H, W, x.dtype.itemsize)

    kernel = functools.partial(
        _pool_kernel, out_h=out_h, out_w=out_w, sh=sh, sw=sw, kh=kh, kw=kw)

    y_nhwc = pl.pallas_call(
        kernel,
        out_shape=jax.ShapeDtypeStruct((N, out_h, out_w, C), x.dtype),
        grid=(N, C // Ct),
        in_specs=[pl.BlockSpec((None, H, W, Ct), lambda n, c: (n, 0, 0, c))],
        out_specs=pl.BlockSpec((None, out_h, out_w, Ct), lambda n, c: (n, 0, 0, c)),
        compiler_params=pltpu.CompilerParams(
            dimension_semantics=("parallel", "parallel"),
            vmem_limit_bytes=32 * 1024 * 1024,
        ),
    )(x_nhwc)

    # Back to the PyTorch NCHW layout.
    return jnp.transpose(y_nhwc, (0, 3, 1, 2))


def _reference(x: np.ndarray, output_size):
    """Pure-numpy reference matching nn.AvgPool2d(kernel, stride)."""
    N, C, H, W = x.shape
    out_h, out_w = output_size
    sh = int(np.floor(H / out_h))
    sw = int(np.floor(W / out_w))
    kh = H - (out_h - 1) * sh
    kw = W - (out_w - 1) * sw
    out = np.zeros((N, C, out_h, out_w), dtype=np.float32)
    for oh in range(out_h):
        for ow in range(out_w):
            win = x[:, :, oh * sh: oh * sh + kh, ow * sw: ow * sw + kw]
            out[:, :, oh, ow] = win.mean(axis=(-2, -1))
    return out


if __name__ == "__main__":
    key = jax.random.PRNGKey(0)
    # Small NCHW input consistent with a conv-net feature map.
    x = jax.random.normal(key, (2, 4, 16, 16), dtype=jnp.float32)

    # Non-trivial case: output_size=(5,5) -> stride=3, kernel=4 (overlapping windows).
    output_size = (5, 5)

    y = adaptive_avg_pool2d_custom(x, output_size)
    y = jax.block_until_ready(y)

    ref = _reference(np.asarray(x), output_size)
    assert y.shape == ref.shape, (y.shape, ref.shape)
    np.testing.assert_allclose(np.asarray(y), ref, rtol=1e-5, atol=1e-5)

    print("KERNEL_OK")
</pallas_src>

<mosaic_0001>
module attributes {stable_mosaic.version = 11 : i64} {
  func.func @_pool_kernel(%arg0: i32, %arg1: i32, %arg2: memref<1x16x16x4xf32, #tpu.memory_space<vmem>>, %arg3: memref<1x5x5x4xf32, #tpu.memory_space<vmem>>) attributes {dimension_semantics = [#tpu.dimension_semantics<parallel>, #tpu.dimension_semantics<parallel>], iteration_bounds = array<i64: 2, 1>, scalar_prefetch = 0 : i64, scratch_operands = 0 : i64, tpu.core_type = #tpu.core_type<tc>, window_params = [{transform_indices = @transform_0, window_bounds = array<i64: 1, 16, 16, 4>}, {transform_indices = @transform_1, window_bounds = array<i64: 1, 5, 5, 4>}]} {
    %c0 = arith.constant 0 : index
    %c0_0 = arith.constant 0 : index
    %c0_1 = arith.constant 0 : index
    %c0_2 = arith.constant 0 : index
    %0 = vector.load %arg2[%c0, %c0_0, %c0_1, %c0_2] : memref<1x16x16x4xf32, #tpu.memory_space<vmem>>, vector<1x16x16x4xf32>
    %1 = vector.shape_cast %0 : vector<1x16x16x4xf32> to vector<16x16x4xf32>
    %2 = vector.extract_strided_slice %1 {offsets = [0, 0, 0], sizes = [4, 16, 4], strides = [1, 1, 1]} : vector<16x16x4xf32> to vector<4x16x4xf32>
    %cst = arith.constant dense<0.000000e+00> : vector<16x4xf32>
    %3 = vector.multi_reduction <add>, %2, %cst [0] : vector<4x16x4xf32> to vector<16x4xf32>
    %4 = vector.extract_strided_slice %1 {offsets = [3, 0, 0], sizes = [4, 16, 4], strides = [1, 1, 1]} : vector<16x16x4xf32> to vector<4x16x4xf32>
    %cst_3 = arith.constant dense<0.000000e+00> : vector<16x4xf32>
    %5 = vector.multi_reduction <add>, %4, %cst_3 [0] : vector<4x16x4xf32> to vector<16x4xf32>
    %6 = vector.extract_strided_slice %1 {offsets = [6, 0, 0], sizes = [4, 16, 4], strides = [1, 1, 1]} : vector<16x16x4xf32> to vector<4x16x4xf32>
    %cst_4 = arith.constant dense<0.000000e+00> : vector<16x4xf32>
    %7 = vector.multi_reduction <add>, %6, %cst_4 [0] : vector<4x16x4xf32> to vector<16x4xf32>
    %8 = vector.extract_strided_slice %1 {offsets = [9, 0, 0], sizes = [4, 16, 4], strides = [1, 1, 1]} : vector<16x16x4xf32> to vector<4x16x4xf32>
    %cst_5 = arith.constant dense<0.000000e+00> : vector<16x4xf32>
    %9 = vector.multi_reduction <add>, %8, %cst_5 [0] : vector<4x16x4xf32> to vector<16x4xf32>
    %10 = vector.extract_strided_slice %1 {offsets = [12, 0, 0], sizes = [4, 16, 4], strides = [1, 1, 1]} : vector<16x16x4xf32> to vector<4x16x4xf32>
    %cst_6 = arith.constant dense<0.000000e+00> : vector<16x4xf32>
    %11 = vector.multi_reduction <add>, %10, %cst_6 [0] : vector<4x16x4xf32> to vector<16x4xf32>
    %12 = vector.shape_cast %3 : vector<16x4xf32> to vector<1x16x4xf32>
    %13 = vector.shape_cast %5 : vector<16x4xf32> to vector<1x16x4xf32>
    %14 = vector.shape_cast %7 : vector<16x4xf32> to vector<1x16x4xf32>
    %15 = vector.shape_cast %9 : vector<16x4xf32> to vector<1x16x4xf32>
    %16 = vector.shape_cast %11 : vector<16x4xf32> to vector<1x16x4xf32>
    %17 = tpu.concatenate %12, %13, %14, %15, %16 in 0 : vector<1x16x4xf32>, vector<1x16x4xf32>, vector<1x16x4xf32>, vector<1x16x4xf32>, vector<1x16x4xf32> -> vector<5x16x4xf32>
    %18 = vector.extract_strided_slice %17 {offsets = [0, 0, 0], sizes = [5, 4, 4], strides = [1, 1, 1]} : vector<5x16x4xf32> to vector<5x4x4xf32>
    %cst_7 = arith.constant dense<0.000000e+00> : vector<5x4xf32>
    %19 = vector.multi_reduction <add>, %18, %cst_7 [1] : vector<5x4x4xf32> to vector<5x4xf32>
    %20 = vector.extract_strided_slice %17 {offsets = [0, 3, 0], sizes = [5, 4, 4], strides = [1, 1, 1]} : vector<5x16x4xf32> to vector<5x4x4xf32>
    %cst_8 = arith.constant dense<0.000000e+00> : vector<5x4xf32>
    %21 = vector.multi_reduction <add>, %20, %cst_8 [1] : vector<5x4x4xf32> to vector<5x4xf32>
    %22 = vector.extract_strided_slice %17 {offsets = [0, 6, 0], sizes = [5, 4, 4], strides = [1, 1, 1]} : vector<5x16x4xf32> to vector<5x4x4xf32>
    %cst_9 = arith.constant dense<0.000000e+00> : vector<5x4xf32>
    %23 = vector.multi_reduction <add>, %22, %cst_9 [1] : vector<5x4x4xf32> to vector<5x4xf32>
    %24 = vector.extract_strided_slice %17 {offsets = [0, 9, 0], sizes = [5, 4, 4], strides = [1, 1, 1]} : vector<5x16x4xf32> to vector<5x4x4xf32>
    %cst_10 = arith.constant dense<0.000000e+00> : vector<5x4xf32>
    %25 = vector.multi_reduction <add>, %24, %cst_10 [1] : vector<5x4x4xf32> to vector<5x4xf32>
    %26 = vector.extract_strided_slice %17 {offsets = [0, 12, 0], sizes = [5, 4, 4], strides = [1, 1, 1]} : vector<5x16x4xf32> to vector<5x4x4xf32>
    %cst_11 = arith.constant dense<0.000000e+00> : vector<5x4xf32>
    %27 = vector.multi_reduction <add>, %26, %cst_11 [1] : vector<5x4x4xf32> to vector<5x4xf32>
    %28 = vector.shape_cast %19 : vector<5x4xf32> to vector<5x1x4xf32>
    %29 = vector.shape_cast %21 : vector<5x4xf32> to vector<5x1x4xf32>
    %30 = vector.shape_cast %23 : vector<5x4xf32> to vector<5x1x4xf32>
    %31 = vector.shape_cast %25 : vector<5x4xf32> to vector<5x1x4xf32>
    %32 = vector.shape_cast %27 : vector<5x4xf32> to vector<5x1x4xf32>
    %33 = tpu.concatenate %28, %29, %30, %31, %32 in 1 : vector<5x1x4xf32>, vector<5x1x4xf32>, vector<5x1x4xf32>, vector<5x1x4xf32>, vector<5x1x4xf32> -> vector<5x5x4xf32>
    %cst_12 = arith.constant 6.250000e-02 : f32
    %34 = vector.broadcast %cst_12 : f32 to vector<5x5x4xf32>
    %35 = arith.mulf %33, %34 : vector<5x5x4xf32>
    %c0_13 = arith.constant 0 : index
    %c0_14 = arith.constant 0 : index
    %c0_15 = arith.constant 0 : index
    %c0_16 = arith.constant 0 : index
    %36 = vector.load %arg3[%c0_13, %c0_14, %c0_15, %c0_16] : memref<1x5x5x4xf32, #tpu.memory_space<vmem>>, vector<1x5x5x4xf32>
    %37 = vector.shape_cast %36 : vector<1x5x5x4xf32> to vector<5x5x4xf32>
    %38 = vector.shape_cast %35 : vector<5x5x4xf32> to vector<1x5x5x4xf32>
    tpu.vector_store %arg3[%c0_13, %c0_14, %c0_15, %c0_16], %38 {strides = array<i32>} : memref<1x5x5x4xf32, #tpu.memory_space<vmem>>, vector<1x5x5x4xf32>,
    return
  }
  func.func @transform_0(%arg0: i32, %arg1: i32) -> (i32, i32, i32, i32) {
    %c0_i32 = arith.constant 0 : i32
    %c0_i32_0 = arith.constant 0 : i32
    %c0_i32_1 = arith.constant 0 : i32
    return %arg0, %c0_i32, %c0_i32_0, %arg1 : i32, i32, i32, i32
  }
  func.func @transform_1(%arg0: i32, %arg1: i32) -> (i32, i32, i32, i32) {
    %c0_i32 = arith.constant 0 : i32
    %c0_i32_0 = arith.constant 0 : i32
    %c0_i32_1 = arith.constant 0 : i32
    return %arg0, %c0_i32, %c0_i32_0, %arg1 : i32, i32, i32, i32
  }
}

</mosaic_0001>

<llo_original>
// kernel: tpu_custom_call.1
$region0: #{tpu_custom_call.1}
  #allocation0 [shape = 'u32[]', space=smem, size = 0x4, offset = 0x4, fixed_abs, tag = 'smem constant byte address 0x4 - core index']
  #allocation1 [shape = 'u32[144,128]{1,0:T(1,128)}', space=vmem, size = 0x12000, scoped, tag = 'internal scratch']
  %s0 = inlined_call_operand.vmem [shape: f32[2,16,16,4], index: 0, kind: input, shape index: {}]
  %s1 = inlined_call_operand.vmem [shape: f32[2,5,5,4], index: 1, kind: output, shape index: {}]
  %s2 = sld [smem:[#allocation0]]
  $region37: #{tpu_custom_call.1} parent=0
    _
  %s4 = ssub.s32 1, %s2
  %s5 = scalar_select 0, %s4, %s2
  loop: start=0, step=1, limit=4
  $region2: #{tpu_custom_call.1} parent=0 // loop_pre_header
    _
  $region3: #{tpu_custom_call.1} parent=0 // loop_header
    %s7 = sphi 0, %s11
    %p8 = scmp.ge.s32.totalorder %s7, 4
    %s14 = sphi 0, %s26
    %s15 = sphi 0, %s22
    %s16 = sphi 0, %s14
    %s17 = sphi 0, %s15
    %s18 = sphi 0, %s16
    %s19 = sphi 0, %s17
    %s31 = sphi 0, %s33
    %s34 = sphi 0, %s31
    %s35 = sphi 0, %s34
    %s51 = sphi 0, %s35
    %s59 = sphi 0, %s61
    %s62 = sphi 0, %s59
    %s63 = sphi 0, %s62
    %s79 = sphi 0, %s63
  $region4: #{tpu_custom_call.1} parent=0 // loop_header_branch
    %10 = sbr.rel (%p8) target = $region8
  $region5: #{tpu_custom_call.1} parent=0 // loop_body
    %s12 = ssub.s32 %s7, 1
    %s13 = ssub.s32 %s7, 2
    %s20 = sadd.s32 1, %s15
    %p21 = scmp.ge.s32.totalorder %s20, 1
    %s22 = scalar_select %p21, 0, %s20
    %s23 = sadd.s32 1, %s14
    %s24 = scalar_select %p21, %s23, %s14
    %p25 = scmp.ge.s32.totalorder %s24, 2
    %s26 = scalar_select %p25, 0, %s24
    %s27 = ssub.s32 %s14, %s26
    %s28 = ssub.s32 %s15, %s22
    %s29 = sor.u32 %s27, %s28
    %p30 = scmp.eq.s32.totalorder %s29, 0
    %s32 = sadd.s32 %s31, 1
    %s33 = scalar_select %p30, %s31, %s32
    %p36 = pneg %p30
    %p37 = scmp.eq.s32.totalorder %s7, 1
    %p38 = por %p36, %p37
    %p39 = scmp.ne.s32.totalorder %s31, %s34
    %p40 = scmp.eq.s32.totalorder %s7, 0
    %p41 = por %p39, %p40
    %p42 = scmp.ne.s32.totalorder %s31, %s34
    %p43 = scmp.eq.s32.totalorder %s12, 1
    %p44 = por %p42, %p43
    %p45 = scmp.ne.s32.totalorder %s34, %s35
    %p46 = scmp.eq.s32.totalorder %s12, 0
    %p47 = por %p45, %p46
    %p48 = scmp.ne.s32.totalorder %s34, %s35
    %p49 = scmp.eq.s32.totalorder %s13, 1
    %p50 = por %p48, %p49
    %p52 = scmp.ne.s32.totalorder %s35, %s51
    %p53 = scmp.eq.s32.totalorder %s13, 0
    %p54 = por %p52, %p53
    %s55 = ssub.s32 %s14, %s26
    %s56 = ssub.s32 %s15, %s22
    %s57 = sor.u32 %s55, %s56
    %p58 = scmp.eq.s32.totalorder %s57, 0
    %s60 = sadd.s32 %s59, 1
    %s61 = scalar_select %p58, %s59, %s60
    %p64 = pneg %p58
    %p65 = scmp.eq.s32.totalorder %s7, 1
    %p66 = por %p64, %p65
    %p67 = scmp.ne.s32.totalorder %s59, %s62
    %p68 = scmp.eq.s32.totalorder %s7, 0
    %p69 = por %p67, %p68
    %p70 = scmp.ne.s32.totalorder %s59, %s62
    %p71 = scmp.eq.s32.totalorder %s12, 1
    %p72 = por %p70, %p71
    %p73 = scmp.ne.s32.totalorder %s62, %s63
    %p74 = scmp.eq.s32.totalorder %s12, 0
    %p75 = por %p73, %p74
    %p76 = scmp.ne.s32.totalorder %s62, %s63
    %p77 = scmp.eq.s32.totalorder %s13, 1
    %p78 = por %p76, %p77
    %p80 = scmp.ne.s32.totalorder %s63, %s79
    %p81 = scmp.eq.s32.totalorder %s13, 0
    %p82 = por %p80, %p81
    %p83 = scmp.le.s32.totalorder 1, %s7
    %p84 = scmp.lt.s32.totalorder %s7, 3
    %p85 = pnand %p83, %p84
    %p86 = pneg %p85
    // Predicated region
    $region9: #{tpu_custom_call.1} parent=5 // pred_check
      _
    $region10: #{tpu_custom_call.1} parent=5 // pred_check_branch
      %88 = sbr.rel (%p85) target = $region12
    $region11: #{tpu_custom_call.1} parent=5 // pred_region
      %s89 = ssub.s32 %s7, 1
    $region12: #{tpu_custom_call.1} parent=5 // pred_fallthru
      _
    %p90 = scmp.lt.s32.totalorder %s7, 2
    // Predicated region
    $region13: #{tpu_custom_call.1} parent=5 // pred_check
      %p91 = pneg %p90
    $region14: #{tpu_custom_call.1} parent=5 // pred_check_branch
      %93 = sbr.rel (%p91) target = $region16
    $region15: #{tpu_custom_call.1} parent=5 // pred_region
      // Predicated region
      $region17: #{tpu_custom_call.1} parent=15 // pred_check
        %p94 = pneg %p41
      $region18: #{tpu_custom_call.1} parent=15 // pred_check_branch
        %96 = sbr.rel (%p94) target = $region20
      $region19: #{tpu_custom_call.1} parent=15 // pred_region
        %p97 = scmp.lt.s32.totalorder %s14, 1
        %s98 = scalar_select %p97, %s14, 1
        %p99 = scmp.lt.s32.totalorder %s15, 0
        %s100 = scalar_select %p99, %s15, 0
        %s101 = smul.addr %s98, 32
        %s102 = sadd.s32 %s100, %s101
        %s103 = smul.addr %s102, 8
        %s104 = scalar_lea.vmem %s0, %s103
      $region20: #{tpu_custom_call.1} parent=15 // pred_fallthru
        _
    $region16: #{tpu_custom_call.1} parent=5 // pred_fallthru
      _
    %p105 = scmp.le.s32.totalorder 1, %s7
    %p106 = scmp.lt.s32.totalorder %s7, 3
    %p107 = pnand %p105, %p106
    %p108 = pneg %p107
    // Predicated region
    $region21: #{tpu_custom_call.1} parent=5 // pred_check
      _
    $region22: #{tpu_custom_call.1} parent=5 // pred_check_branch
      %110 = sbr.rel (%p107) target = $region24
    $region23: #{tpu_custom_call.1} parent=5 // pred_region
      %s111 = ssub.s32 %s7, 1
      %p112 = scmp.lt.s32.totalorder %s16, 1
      %s113 = scalar_select %p112, %s16, 1
      %p114 = scmp.lt.s32.totalorder %s17, 0
      %s115 = scalar_select %p114, %s17, 0
      %s116 = smul.addr %s113, 32
      %s117 = sadd.s32 %s115, %s116
      %s118 = smul.addr %s117, 8
      %s119 = scalar_lea.vmem %s0, %s118
      %p120 = pneg %p47
      %p121 = pneg %p44
      %p122 = pneg %p75
      %p123 = pneg %p72
      %p124 = scmp.lt.s32.totalorder %s16, 1
      %s125 = scalar_select %p124, %s16, 1
      %p126 = scmp.lt.s32.totalorder %s17, 0
      %s127 = scalar_select %p126, %s17, 0
      %s128 = smul.addr %s125, 5
      %s129 = sadd.s32 %s127, %s128
      %s130 = smul.addr %s129, 8
      %s131 = scalar_lea.vmem %s1, %s130
      %p132 = scmp.lt.s32.totalorder %s16, 1
      %s133 = scalar_select %p132, %s16, 1
      %p134 = scmp.lt.s32.totalorder %s17, 0
      %s135 = scalar_select %p134, %s17, 0
      %s136 = smul.addr %s133, 32
      %s137 = sadd.s32 %s135, %s136
      %s138 = smul.addr %s137, 8
      %s139 = scalar_lea.vmem %s0, %s138
      %p140 = scmp.lt.s32.totalorder %s16, 1
      %s141 = scalar_select %p140, %s16, 1
      %p142 = scmp.lt.s32.totalorder %s17, 0
      %s143 = scalar_select %p142, %s17, 0
      %s144 = smul.addr %s141, 5
      %s145 = sadd.s32 %s143, %s144
      %s146 = smul.addr %s145, 8
      %s147 = scalar_lea.vmem %s1, %s146
      %v148 = vld [vmem:[%s139] sm:$0xff]
      %v149 = vld [vmem:[%s139 + $0x8] sm:$0xff]
      %v150 = vld [vmem:[%s139 + $0x10] sm:$0xff]
      %v151 = vld [vmem:[%s139 + $0x18] sm:$0xff]
      %v152 = vld [vmem:[%s139 + $0x20] sm:$0xff]
      %v153 = vld [vmem:[%s139 + $0x28] sm:$0xff]
      %v154 = vld [vmem:[%s139 + $0x30] sm:$0xff]
      %v155 = vld [vmem:[%s139 + $0x38] sm:$0xff]
      %v156 = vld [vmem:[%s139 + $0x40] sm:$0xff]
      %v157 = vld [vmem:[%s139 + $0x48] sm:$0xff]
      %v158 = vld [vmem:[%s139 + $0x50] sm:$0xff]
      %v159 = vld [vmem:[%s139 + $0x58] sm:$0xff]
      %v160 = vld [vmem:[%s139 + $0x60] sm:$0xff]
      %v161 = vld [vmem:[%s139 + $0x68] sm:$0xff]
      %v162 = vld [vmem:[%s139 + $0x70] sm:$0xff]
      %v163 = vld [vmem:[%s139 + $0x78] sm:$0xff]
      %v164 = vld [vmem:[%s139 + $0x80] sm:$0xff]
      %v165 = vld [vmem:[%s139 + $0x88] sm:$0xff]
      %v166 = vld [vmem:[%s139 + $0x90] sm:$0xff]
      %v167 = vld [vmem:[%s139 + $0x98] sm:$0xff]
      %v168 = vld [vmem:[%s139 + $0xa0] sm:$0xff]
      %v169 = vld [vmem:[%s139 + $0xa8] sm:$0xff]
      %v170 = vld [vmem:[%s139 + $0xb0] sm:$0xff]
      %v171 = vld [vmem:[%s139 + $0xb8] sm:$0xff]
      %v172 = vld [vmem:[%s139 + $0xc0] sm:$0xff]
      %v173 = vld [vmem:[%s139 + $0xc8] sm:$0xff]
      %v174 = vld [vmem:[%s139 + $0xd0] sm:$0xff]
      %v175 = vld [vmem:[%s139 + $0xd8] sm:$0xff]
      %v176 = vld [vmem:[%s139 + $0xe0] sm:$0xff]
      %v177 = vld [vmem:[%s139 + $0xe8] sm:$0xff]
      %v178 = vld [vmem:[%s139 + $0xf0] sm:$0xff]
      %v179 = vld [vmem:[%s139 + $0xf8] sm:$0xff]
      %vm180 = vcmask 31744
      %v181 = vsel %vm180, %v148, 0.0
      %v182 = vsel %vm180, %v150, 0.0
      %v183 = vadd.f32 %v181, %v182
      %v184 = vsel %vm180, %v152, 0.0
      %v185 = vadd.f32 %v183, %v184
      %v186 = vsel %vm180, %v154, 0.0
      %v187 = vadd.f32 %v185, %v186
      %v188 = vsel %vm180, %v149, 0.0
      %v189 = vsel %vm180, %v151, 0.0
      %v190 = vadd.f32 %v188, %v189
      %v191 = vsel %vm180, %v153, 0.0
      %v192 = vadd.f32 %v190, %v191
      %v193 = vsel %vm180, %v155, 0.0
      %v194 = vadd.f32 %v192, %v193
      %v195 = vsel %vm180, %v156, 0.0
      %v196 = vadd.f32 %v186, %v195
      %v197 = vsel %vm180, %v158, 0.0
      %v198 = vadd.f32 %v196, %v197
      %v199 = vsel %vm180, %v160, 0.0
      %v200 = vadd.f32 %v198, %v199
      %v201 = vsel %vm180, %v157, 0.0
      %v202 = vadd.f32 %v193, %v201
      %v203 = vsel %vm180, %v159, 0.0
      %v204 = vadd.f32 %v202, %v203
      %v205 = vsel %vm180, %v161, 0.0
      %v206 = vadd.f32 %v204, %v205
      %v207 = vsel %vm180, %v162, 0.0
      %v208 = vadd.f32 %v199, %v207
      %v209 = vsel %vm180, %v164, 0.0
      %v210 = vadd.f32 %v208, %v209
      %v211 = vsel %vm180, %v166, 0.0
      %v212 = vadd.f32 %v210, %v211
      %v213 = vsel %vm180, %v163, 0.0
      %v214 = vadd.f32 %v205, %v213
      %v215 = vsel %vm180, %v165, 0.0
      %v216 = vadd.f32 %v214, %v215
      %v217 = vsel %vm180, %v167, 0.0
      %v218 = vadd.f32 %v216, %v217
      %v219 = vsel %vm180, %v168, 0.0
      %v220 = vadd.f32 %v211, %v219
      %v221 = vsel %vm180, %v170, 0.0
      %v222 = vadd.f32 %v220, %v221
      %v223 = vsel %vm180, %v172, 0.0
      %v224 = vadd.f32 %v222, %v223
      %v225 = vsel %vm180, %v169, 0.0
      %v226 = vadd.f32 %v217, %v225
      %v227 = vsel %vm180, %v171, 0.0
      %v228 = vadd.f32 %v226, %v227
      %v229 = vsel %vm180, %v173, 0.0
      %v230 = vadd.f32 %v228, %v229
      %v231 = vsel %vm180, %v174, 0.0
      %v232 = vadd.f32 %v223, %v231
      %v233 = vsel %vm180, %v176, 0.0
      %v234 = vadd.f32 %v232, %v233
      %v235 = vsel %vm180, %v178, 0.0
      %v236 = vadd.f32 %v234, %v235
      %v237 = vsel %vm180, %v175, 0.0
      %v238 = vadd.f32 %v229, %v237
      %v239 = vsel %vm180, %v177, 0.0
      %v240 = vadd.f32 %v238, %v239
      %v241 = vsel %vm180, %v179, 0.0
      %v242 = vadd.f32 %v240, %v241
      %vm243 = vcmask 27648
      %v244 = vsel %vm243, %v187, 0.0
      %v245 = vrot.slane %v244, 4
      %v246 = vadd.f32 %v244, %v245
      %v247 = vrot.slane %v246, 2
      %v248 = vadd.f32 %v246, %v247
      %v249 = vrot.slane %v248, 1
      %v250 = vadd.f32 %v248, %v249
      %v251 = vsel %vm243, %v200, 0.0
      %v252 = vrot.slane %v251, 4
      %v253 = vadd.f32 %v251, %v252
      %v254 = vrot.slane %v253, 2
      %v255 = vadd.f32 %v253, %v254
      %v256 = vrot.slane %v255, 1
      %v257 = vadd.f32 %v255, %v256
      %v258 = vsel %vm243, %v212, 0.0
      %v259 = vrot.slane %v258, 4
      %v260 = vadd.f32 %v258, %v259
      %v261 = vrot.slane %v260, 2
      %v262 = vadd.f32 %v260, %v261
      %v263 = vrot.slane %v262, 1
      %v264 = vadd.f32 %v262, %v263
      %v265 = vsel %vm243, %v224, 0.0
      %v266 = vrot.slane %v265, 4
      %v267 = vadd.f32 %v265, %v266
      %v268 = vrot.slane %v267, 2
      %v269 = vadd.f32 %v267, %v268
      %v270 = vrot.slane %v269, 1
      %v271 = vadd.f32 %v269, %v270
      %v272 = vsel %vm243, %v236, 0.0
      %v273 = vrot.slane %v272, 4
      %v274 = vadd.f32 %v272, %v273
      %v275 = vrot.slane %v274, 2
      %v276 = vadd.f32 %v274, %v275
      %v277 = vrot.slane %v276, 1
      %v278 = vadd.f32 %v276, %v277
      %v284 = vrot.slane %v187, 3
      %v285 = vrot.slane %v200, 3
      %v286 = vrot.slane %v212, 3
      %v287 = vrot.slane %v224, 3
      %v288 = vrot.slane %v236, 3
      %v294 = vsel %vm243, %v284, 0.0
      %v295 = vrot.slane %v294, 4
      %v296 = vadd.f32 %v294, %v295
      %v297 = vrot.slane %v296, 2
      %v298 = vadd.f32 %v296, %v297
      %v299 = vrot.slane %v298, 1
      %v300 = vadd.f32 %v298, %v299
      %v301 = vsel %vm243, %v285, 0.0
      %v302 = vrot.slane %v301, 4
      %v303 = vadd.f32 %v301, %v302
      %v304 = vrot.slane %v303, 2
      %v305 = vadd.f32 %v303, %v304
      %v306 = vrot.slane %v305, 1
      %v307 = vadd.f32 %v305, %v306
      %v308 = vsel %vm243, %v286, 0.0
      %v309 = vrot.slane %v308, 4
      %v310 = vadd.f32 %v308, %v309
      %v311 = vrot.slane %v310, 2
      %v312 = vadd.f32 %v310, %v311
      %v313 = vrot.slane %v312, 1
      %v314 = vadd.f32 %v312, %v313
      %v315 = vsel %vm243, %v287, 0.0
      %v316 = vrot.slane %v315, 4
      %v317 = vadd.f32 %v315, %v316
      %v318 = vrot.slane %v317, 2
      %v319 = vadd.f32 %v317, %v318
      %v320 = vrot.slane %v319, 1
      %v321 = vadd.f32 %v319, %v320
      %v322 = vsel %vm243, %v288, 0.0
      %v323 = vrot.slane %v322, 4
      %v324 = vadd.f32 %v322, %v323
      %v325 = vrot.slane %v324, 2
      %v326 = vadd.f32 %v324, %v325
      %v327 = vrot.slane %v326, 1
      %v328 = vadd.f32 %v326, %v327
      %vm334 = vcmask 1041408
      %v335 = vrot.slane %v187, 6
      %v336 = vrot.slane %v194, 6
      %v337 = vsel %vm334, %v335, %v336
      %v338 = vrot.slane %v200, 6
      %v339 = vrot.slane %v206, 6
      %v340 = vsel %vm334, %v338, %v339
      %v341 = vrot.slane %v212, 6
      %v342 = vrot.slane %v218, 6
      %v343 = vsel %vm334, %v341, %v342
      %v344 = vrot.slane %v224, 6
      %v345 = vrot.slane %v230, 6
      %v346 = vsel %vm334, %v344, %v345
      %v347 = vrot.slane %v236, 6
      %v348 = vrot.slane %v242, 6
      %v349 = vsel %vm334, %v347, %v348
      %v355 = vsel %vm243, %v337, 0.0
      %v356 = vrot.slane %v355, 4
      %v357 = vadd.f32 %v355, %v356
      %v358 = vrot.slane %v357, 2
      %v359 = vadd.f32 %v357, %v358
      %v360 = vrot.slane %v359, 1
      %v361 = vadd.f32 %v359, %v360
      %v362 = vsel %vm243, %v340, 0.0
      %v363 = vrot.slane %v362, 4
      %v364 = vadd.f32 %v362, %v363
      %v365 = vrot.slane %v364, 2
      %v366 = vadd.f32 %v364, %v365
      %v367 = vrot.slane %v366, 1
      %v368 = vadd.f32 %v366, %v367
      %v369 = vsel %vm243, %v343, 0.0
      %v370 = vrot.slane %v369, 4
      %v371 = vadd.f32 %v369, %v370
      %v372 = vrot.slane %v371, 2
      %v373 = vadd.f32 %v371, %v372
      %v374 = vrot.slane %v373, 1
      %v375 = vadd.f32 %v373, %v374
      %v376 = vsel %vm243, %v346, 0.0
      %v377 = vrot.slane %v376, 4
      %v378 = vadd.f32 %v376, %v377
      %v379 = vrot.slane %v378, 2
      %v380 = vadd.f32 %v378, %v379
      %v381 = vrot.slane %v380, 1
      %v382 = vadd.f32 %v380, %v381
      %v383 = vsel %vm243, %v349, 0.0
      %v384 = vrot.slane %v383, 4
      %v385 = vadd.f32 %v383, %v384
      %v386 = vrot.slane %v385, 2
      %v387 = vadd.f32 %v385, %v386
      %v388 = vrot.slane %v387, 1
      %v389 = vadd.f32 %v387, %v388
      %v390 = vrot.slane %v194, 1
      %v391 = vrot.slane %v206, 1
      %v392 = vrot.slane %v218, 1
      %v393 = vrot.slane %v230, 1
      %v394 = vrot.slane %v242, 1
      %v400 = vsel %vm243, %v390, 0.0
      %v401 = vrot.slane %v400, 4
      %v402 = vadd.f32 %v400, %v401
      %v403 = vrot.slane %v402, 2
      %v404 = vadd.f32 %v402, %v403
      %v405 = vrot.slane %v404, 1
      %v406 = vadd.f32 %v404, %v405
      %v407 = vsel %vm243, %v391, 0.0
      %v408 = vrot.slane %v407, 4
      %v409 = vadd.f32 %v407, %v408
      %v410 = vrot.slane %v409, 2
      %v411 = vadd.f32 %v409, %v410
      %v412 = vrot.slane %v411, 1
      %v413 = vadd.f32 %v411, %v412
      %v414 = vsel %vm243, %v392, 0.0
      %v415 = vrot.slane %v414, 4
      %v416 = vadd.f32 %v414, %v415
      %v417 = vrot.slane %v416, 2
      %v418 = vadd.f32 %v416, %v417
      %v419 = vrot.slane %v418, 1
      %v420 = vadd.f32 %v418, %v419
      %v421 = vsel %vm243, %v393, 0.0
      %v422 = vrot.slane %v421, 4
      %v423 = vadd.f32 %v421, %v422
      %v424 = vrot.slane %v423, 2
      %v425 = vadd.f32 %v423, %v424
      %v426 = vrot.slane %v425, 1
      %v427 = vadd.f32 %v425, %v426
      %v428 = vsel %vm243, %v394, 0.0
      %v429 = vrot.slane %v428, 4
      %v430 = vadd.f32 %v428, %v429
      %v431 = vrot.slane %v430, 2
      %v432 = vadd.f32 %v430, %v431
      %v433 = vrot.slane %v432, 1
      %v434 = vadd.f32 %v432, %v433
      %v435 = vrot.slane %v194, 4
      %v436 = vrot.slane %v206, 4
      %v437 = vrot.slane %v218, 4
      %v438 = vrot.slane %v230, 4
      %v439 = vrot.slane %v242, 4
      %v445 = vsel %vm243, %v435, 0.0
      %v446 = vrot.slane %v445, 4
      %v447 = vadd.f32 %v445, %v446
      %v448 = vrot.slane %v447, 2
      %v449 = vadd.f32 %v447, %v448
      %v450 = vrot.slane %v449, 1
      %v451 = vadd.f32 %v449, %v450
      %v452 = vsel %vm243, %v436, 0.0
      %v453 = vrot.slane %v452, 4
      %v454 = vadd.f32 %v452, %v453
      %v455 = vrot.slane %v454, 2
      %v456 = vadd.f32 %v454, %v455
      %v457 = vrot.slane %v456, 1
      %v458 = vadd.f32 %v456, %v457
      %v459 = vsel %vm243, %v437, 0.0
      %v460 = vrot.slane %v459, 4
      %v461 = vadd.f32 %v459, %v460
      %v462 = vrot.slane %v461, 2
      %v463 = vadd.f32 %v461, %v462
      %v464 = vrot.slane %v463, 1
      %v465 = vadd.f32 %v463, %v464
      %v466 = vsel %vm243, %v438, 0.0
      %v467 = vrot.slane %v466, 4
      %v468 = vadd.f32 %v466, %v467
      %v469 = vrot.slane %v468, 2
      %v470 = vadd.f32 %v468, %v469
      %v471 = vrot.slane %v470, 1
      %v472 = vadd.f32 %v470, %v471
      %v473 = vsel %vm243, %v439, 0.0
      %v474 = vrot.slane %v473, 4
      %v475 = vadd.f32 %v473, %v474
      %v476 = vrot.slane %v475, 2
      %v477 = vadd.f32 %v475, %v476
      %v478 = vrot.slane %v477, 1
      %v479 = vadd.f32 %v477, %v478
      %vm480 = vcmask 1040384
      %v481 = vsel %vm480, %v250, %v300
      %v482 = vsel %vm480, %v257, %v307
      %v483 = vsel %vm480, %v264, %v314
      %v484 = vsel %vm480, %v271, %v321
      %v485 = vsel %vm480, %v278, %v328
      %v486 = vsel %vm334, %v481, %v361
      %v487 = vsel %vm334, %v482, %v368
      %v488 = vsel %vm334, %v483, %v375
      %v489 = vsel %vm334, %v484, %v382
      %v490 = vsel %vm334, %v485, %v389
      %vm491 = vcmask 1042432
      %v492 = vsel %vm491, %v486, %v406
      %v493 = vsel %vm491, %v487, %v413
      %v494 = vsel %vm491, %v488, %v420
      %v495 = vsel %vm491, %v489, %v427
      %v496 = vsel %vm491, %v490, %v434
      %vm497 = vcmask 1043456
      %v498 = vsel %vm497, %v492, %v451
      %v499 = vsel %vm497, %v493, %v458
      %v500 = vsel %vm497, %v494, %v465
      %v501 = vsel %vm497, %v495, %v472
      %v502 = vsel %vm497, %v496, %v479
      %v503 = vmul.f32 %v498, 0.0625
      %v504 = vmul.f32 %v499, 0.0625
      %v505 = vmul.f32 %v500, 0.0625
      %v506 = vmul.f32 %v501, 0.0625
      %v507 = vmul.f32 %v502, 0.0625
      %vm508 = vcmask 28672
      %509 = vst.msk [vmem:[%s147] sm:$0x1f] %vm508, %v503
      %510 = vst.msk [vmem:[%s147 + $0x8] sm:$0x1f] %vm508, %v504
      %511 = vst.msk [vmem:[%s147 + $0x10] sm:$0x1f] %vm508, %v505
      %512 = vst.msk [vmem:[%s147 + $0x18] sm:$0x1f] %vm508, %v506
      %513 = vst.msk [vmem:[%s147 + $0x20] sm:$0x1f] %vm508, %v507
      %p514 = scmp.lt.s32.totalorder %s16, 1
      %s515 = scalar_select %p514, %s16, 1
      %p516 = scmp.lt.s32.totalorder %s17, 0
      %s517 = scalar_select %p516, %s17, 0
      %s518 = smul.addr %s515, 5
      %s519 = sadd.s32 %s517, %s518
      %s520 = smul.addr %s519, 8
      %s521 = scalar_lea.vmem %s1, %s520
      // Predicated region
      $region25: #{tpu_custom_call.1} parent=23 // pred_check
        %p522 = pneg %p72
      $region26: #{tpu_custom_call.1} parent=23 // pred_check_branch
        %524 = sbr.rel (%p522) target = $region28
      $region27: #{tpu_custom_call.1} parent=23 // pred_region
        _
      $region28: #{tpu_custom_call.1} parent=23 // pred_fallthru
        _
    $region24: #{tpu_custom_call.1} parent=5 // pred_fallthru
      _
    %p525 = scmp.le.s32.totalorder 2, %s7
    // Predicated region
    $region29: #{tpu_custom_call.1} parent=5 // pred_check
      %p526 = pneg %p525
    $region30: #{tpu_custom_call.1} parent=5 // pred_check_branch
      %528 = sbr.rel (%p526) target = $region32
    $region31: #{tpu_custom_call.1} parent=5 // pred_region
      %s529 = ssub.s32 %s7, 2
      // Predicated region
      $region33: #{tpu_custom_call.1} parent=31 // pred_check
        %p530 = pneg %p78
      $region34: #{tpu_custom_call.1} parent=31 // pred_check_branch
        %532 = sbr.rel (%p530) target = $region36
      $region35: #{tpu_custom_call.1} parent=31 // pred_region
        %p533 = scmp.lt.s32.totalorder %s18, 1
        %s534 = scalar_select %p533, %s18, 1
        %p535 = scmp.lt.s32.totalorder %s19, 0
        %s536 = scalar_select %p535, %s19, 0
        %s537 = smul.addr %s534, 5
        %s538 = sadd.s32 %s536, %s537
        %s539 = smul.addr %s538, 8
        %s540 = scalar_lea.vmem %s1, %s539
      $region36: #{tpu_custom_call.1} parent=31 // pred_fallthru
        _
    $region32: #{tpu_custom_call.1} parent=5 // pred_fallthru
      _
  $region6: #{tpu_custom_call.1} parent=0 // loop_footer
    %s11 = sadd.s32 1, %s7
  $region7: #{tpu_custom_call.1} parent=0 // loop_footer_branch
    %6 = sbr.rel target = $region3
  $region8: #{tpu_custom_call.1} parent=0 // loop_exit
    _

</llo_original>
